<compile_context>
chip_gen: v6e
topology: v6e:2x2x1
jax: 0.10.0
libtpu: 0.0.40
codegen_flags: <defaults>
</compile_context>

<pallas_src>
import functools

import jax
import jax.numpy as jnp
from jax.experimental import pallas as pl
from jax.experimental.pallas import tpu as pltpu


def _round_up(x, m):
    return (x + m - 1) // m * m


def _mean_pool_kernel(T, feat_ref, mask_ref, w_ref, b_ref, out_ref, acc_ref, fneg_ref):
    """Grid = (batch tiles ["parallel"], time tiles ["arbitrary", innermost]).

    feat_ref: (Bb, Tt, D)  features (any float dtype; upcast to f32 in-kernel)
    mask_ref: (Bb, Tt) f32 attention-mask logits
    w_ref:    (D, Dp)  f32 linear weight, transposed + output dim zero-padded to 128-mult
    b_ref:    (1, Dp)  f32 linear bias (padded)
    out_ref:  (Bb, Dp) f32 pooled + projected rows (lane-dense)
    acc_ref:  (Bb, D)  f32 running sum of masked tanh(feature) over time
    fneg_ref: (Bb, 1)  i32 running first-negative-mask index (sentinel T if none seen)
    """
    t = pl.program_id(1)
    nt = pl.num_programs(1)
    Bb, Tt, D = feat_ref.shape
    t0 = t * Tt

    @pl.when(t == 0)
    def _():
        acc_ref[...] = jnp.zeros_like(acc_ref)
        fneg_ref[...] = jnp.full((Bb, 1), T, dtype=jnp.int32)  # sentinel: no negative yet

    # ---- update the running first-negative index with this time tile -----------------
    m = mask_ref[...]                                            # (Bb, Tt)
    t_lane = t0 + jax.lax.broadcasted_iota(jnp.int32, (Bb, Tt), 1)
    neg_here = (m < 0.0) & (t_lane < T)                          # guard padded tail tile
    cand = jnp.min(jnp.where(neg_here, t_lane, T), axis=1, keepdims=True)
    fneg = jnp.minimum(fneg_ref[...], cand)                      # (Bb, 1)
    fneg_ref[...] = fneg

    # ---- accumulate masked tanh(feature) over this time tile -------------------------
    # Valid timesteps satisfy t <= first_neg (i.e. t < length = first_neg + 1).  Rows
    # whose first negative lies in a *later* tile still carry the sentinel T here, so
    # the whole current tile is (correctly) treated as valid for them.
    x = feat_ref[...].astype(jnp.float32)                        # stream bf16/f32, math f32
    t_sub = t0 + jax.lax.broadcasted_iota(jnp.int32, (Bb, Tt, 1), 1)
    valid = (t_sub <= fneg.reshape(Bb, 1, 1)) & (t_sub < T)
    acc_ref[...] += jnp.sum(jnp.where(valid, jnp.tanh(x), 0.0), axis=1)

    # ---- finalize: scale by 1/length and apply the Linear once per pooled row --------
    @pl.when(t == nt - 1)
    def _():
        length = jnp.minimum(fneg_ref[...] + 1, T).astype(jnp.float32)   # (Bb, 1)
        inv_len = pl.reciprocal(length, approx=True)             # EUP slot; tiny int lengths
        pooled = acc_ref[...] * inv_len                          # (Bb, D)
        out_ref[...] = (
            jnp.dot(pooled, w_ref[...], preferred_element_type=jnp.float32) + b_ref[...]
        )


def _choose_tiles(B, T, D, feat_block_bytes):
    """Pick (Bb, Tt) so one feature block stays under `feat_block_bytes` (f32 equiv)."""
    elt = 4
    # Time tile: whole T when it fits with a minimal 8-row batch tile, otherwise a
    # multiple of 128 (keeps the mask block's lane dim and the feature block's sublane
    # dim legal when the tile is not the full extent).
    if T <= 128 or 8 * T * D * elt <= feat_block_bytes:
        Tt = T
    else:
        Tt = max(128, feat_block_bytes // (8 * D * elt) // 128 * 128)
        Tt = min(Tt, (T // 128) * 128)

    per_row = Tt * D * elt
    Bb_fit = max(8, feat_block_bytes // per_row // 8 * 8)
    if B <= 8:
        Bb = B                      # block dim == full array dim is always a legal block
    else:
        Bb = min(Bb_fit, _round_up(B, 8))
        # Keep >= 2 batch grid steps: the "parallel" axis can then shard across both
        # v7x TensorCores and the input pipeline has something to overlap.
        half = _round_up(pl.cdiv(B, 2), 8)
        Bb = max(8, min(Bb, half))
    return Bb, Tt


def mean_module(feature, att_mask, weight, bias, *, feat_block_bytes=6 << 20):
    """Pallas forward of the PyTorch `Mean` module.

    feature:  [B, T, D] float (f32 or bf16; streamed as-is, math in f32)
    att_mask: [B, T, 1] float attention-mask logits
    weight:   [D, D]    f32 (PyTorch nn.Linear layout: out x in)
    bias:     [D]       f32
    returns:  [B, D]    f32
    """
    B, T, D = feature.shape
    f32 = jnp.float32
    Dp = _round_up(D, 128)
    Bb, Tt = _choose_tiles(B, T, D, feat_block_bytes)
    grid = (pl.cdiv(B, Bb), pl.cdiv(T, Tt))

    # Only tiny side inputs are copied/padded here; the big [B, T, D] feature tensor is
    # passed through untouched (no extra HBM pass before the kernel).
    mask = att_mask.reshape(B, T).astype(f32)
    wt = jnp.pad(weight.T.astype(f32), ((0, 0), (0, Dp - D)))     # (D, Dp): x @ wt == x @ W^T
    b2 = jnp.pad(bias.astype(f32), (0, Dp - D)).reshape(1, Dp)

    # VMEM budget from the actual tiles (double-buffered feature/mask/output, weight,
    # scratch) with headroom for Mosaic's tanh/select temporaries; capped at v7x's 64 MiB.
    feat_elt = jnp.dtype(feature.dtype).itemsize
    need = (2 * Bb * Tt * D * feat_elt + 2 * Bb * Tt * 4
            + 2 * D * Dp * 4 + 2 * Dp * 4
            + 2 * Bb * Dp * 4 + Bb * D * 4 + Bb * 4)
    vmem_limit = int(min(64 << 20, max(32 << 20, 3 * need)))

    out = pl.pallas_call(
        functools.partial(_mean_pool_kernel, T),
        out_shape=jax.ShapeDtypeStruct((B, Dp), f32),
        grid_spec=pltpu.PrefetchScalarGridSpec(
            num_scalar_prefetch=0,
            grid=grid,
            in_specs=[
                pl.BlockSpec((Bb, Tt, D), lambda b, t: (b, t, 0)),   # feature (streamed)
                pl.BlockSpec((Bb, Tt), lambda b, t: (b, t)),         # mask logits
                pl.BlockSpec((D, Dp), lambda b, t: (0, 0)),          # weight (const index)
                pl.BlockSpec((1, Dp), lambda b, t: (0, 0)),          # bias   (const index)
            ],
            out_specs=pl.BlockSpec((Bb, Dp), lambda b, t: (b, 0)),   # lane-dense output
            scratch_shapes=[
                pltpu.VMEM((Bb, D), jnp.float32),    # running sum of tanh(feature)
                pltpu.VMEM((Bb, 1), jnp.int32),      # running first-negative index
            ],
        ),
        compiler_params=pltpu.CompilerParams(
            dimension_semantics=("parallel", "arbitrary"),
            vmem_limit_bytes=vmem_limit,
        ),
    )(feature, mask, wt, b2)

    return out[:, :D]


if __name__ == "__main__":
    B, T, D = 2, 16, 32
    key = jax.random.PRNGKey(0)
    k1, k2, k3 = jax.random.split(key, 3)

    feature = jax.random.normal(k1, (B, T, D), dtype=jnp.float32)

    # Deterministic nn.Linear(D, D)-style init: U(-1/sqrt(D), 1/sqrt(D))
    bound = 1.0 / (D ** 0.5)
    weight = jax.random.uniform(k2, (D, D), minval=-bound, maxval=bound, dtype=jnp.float32)
    bias = jax.random.uniform(k3, (D,), minval=-bound, maxval=bound, dtype=jnp.float32)

    # att_mask logits: batch 0 has no negatives (length = T),
    # batch 1 goes negative starting at t = 5 (length = 6).
    att_mask = jnp.ones((B, T, 1), dtype=jnp.float32)
    att_mask = att_mask.at[1, 5:, 0].set(-1.0)

    out = mean_module(feature, att_mask, weight, bias)
    out = jax.block_until_ready(out)

    # Pure-JAX reference of the PyTorch forward (Linear per timestep, then masked mean),
    # computed at full f32 matmul precision.
    lin = jnp.einsum("btd,jd->btj", jnp.tanh(feature), weight,
                     precision=jax.lax.Precision.HIGHEST) + bias
    lengths = [T, 6]
    ref = jnp.stack([jnp.mean(lin[i, :lengths[i]], axis=0) for i in range(B)])

    assert out.shape == (B, D)
    # The kernel pools before the Linear (exact algebra; different f32 rounding order and
    # default TPU MXU pass count on the single pooled matmul), so allow matmul-precision
    # level tolerance.
    assert jnp.allclose(out, ref, atol=5e-3, rtol=5e-3), float(jnp.max(jnp.abs(out - ref)))

    print("KERNEL_OK")
</pallas_src>

<mosaic_0001>
module attributes {stable_mosaic.version = 11 : i64} {
  func.func @_mean_pool_kernel(%arg0: i32, %arg1: i32, %arg2: memref<2x16x32xf32, #tpu.memory_space<vmem>>, %arg3: memref<2x16xf32, #tpu.memory_space<vmem>>, %arg4: memref<32x128xf32, #tpu.memory_space<vmem>>, %arg5: memref<1x128xf32, #tpu.memory_space<vmem>>, %arg6: memref<2x128xf32, #tpu.memory_space<vmem>>, %arg7: memref<2x32xf32, #tpu.memory_space<vmem>>, %arg8: memref<2x1xi32, #tpu.memory_space<vmem>>) attributes {dimension_semantics = [#tpu.dimension_semantics<parallel>, #tpu.dimension_semantics<arbitrary>], iteration_bounds = array<i64: 1, 1>, scalar_prefetch = 0 : i64, scratch_operands = 2 : i64, tpu.core_type = #tpu.core_type<tc>, window_params = [{transform_indices = @transform_0, window_bounds = array<i64: 2, 16, 32>}, {transform_indices = @transform_1, window_bounds = array<i64: 2, 16>}, {pipeline_mode = #tpu.pipeline_mode<synchronous>, transform_indices = @transform_2, window_bounds = array<i64: 32, 128>}, {pipeline_mode = #tpu.pipeline_mode<synchronous>, transform_indices = @transform_3, window_bounds = array<i64: 1, 128>}, {transform_indices = @transform_4, window_bounds = array<i64: 2, 128>}]} {
    %c16_i32 = arith.constant 16 : i32
    %0 = arith.muli %arg1, %c16_i32 : i32
    %c0_i32 = arith.constant 0 : i32
    %1 = arith.cmpi eq, %arg1, %c0_i32 : i32
    %2 = arith.extui %1 : i1 to i32
    %c0_i32_0 = arith.constant 0 : i32
    %3 = arith.cmpi ne, %2, %c0_i32_0 : i32
    scf.if %3 {
      %cst_21 = arith.constant 0.000000e+00 : f32
      %42 = vector.broadcast %cst_21 : f32 to vector<2x32xf32>
      %c0_22 = arith.constant 0 : index
      %c0_23 = arith.constant 0 : index
      %43 = vector.load %arg7[%c0_22, %c0_23] : memref<2x32xf32, #tpu.memory_space<vmem>>, vector<2x32xf32>
      tpu.vector_store %arg7[%c0_22, %c0_23], %42 {strides = array<i32>} : memref<2x32xf32, #tpu.memory_space<vmem>>, vector<2x32xf32>,
      %c16_i32_24 = arith.constant 16 : i32
      %44 = vector.broadcast %c16_i32_24 : i32 to vector<2x1xi32>
      %c0_25 = arith.constant 0 : index
      %c0_26 = arith.constant 0 : index
      %45 = vector.load %arg8[%c0_25, %c0_26] : memref<2x1xi32, #tpu.memory_space<vmem>>, vector<2x1xi32>
      tpu.vector_store %arg8[%c0_25, %c0_26], %44 {strides = array<i32>} : memref<2x1xi32, #tpu.memory_space<vmem>>, vector<2x1xi32>,
    } else {
    }
    %c0 = arith.constant 0 : index
    %c0_1 = arith.constant 0 : index
    %4 = vector.load %arg3[%c0, %c0_1] : memref<2x16xf32, #tpu.memory_space<vmem>>, vector<2x16xf32>
    %5 = tpu.iota {dimensions = array<i32: 1>} : vector<2x16xi32>
    %6 = vector.broadcast %0 : i32 to vector<2x16xi32>
    %7 = arith.addi %6, %5 : vector<2x16xi32>
    %cst = arith.constant 0.000000e+00 : f32
    %8 = vector.broadcast %cst : f32 to vector<2x16xf32>
    %9 = arith.cmpf olt, %4, %8 : vector<2x16xf32>
    %c16_i32_2 = arith.constant 16 : i32
    %10 = vector.broadcast %c16_i32_2 : i32 to vector<2x16xi32>
    %11 = arith.cmpi slt, %7, %10 : vector<2x16xi32>
    %12 = arith.andi %9, %11 : vector<2x16xi1>
    %c16_i32_3 = arith.constant 16 : i32
    %13 = vector.broadcast %c16_i32_3 : i32 to vector<2x16xi32>
    %14 = arith.select %12, %7, %13 : vector<2x16xi1>, vector<2x16xi32>
    %cst_4 = arith.constant dense<2147483647> : vector<2xi32>
    %15 = vector.multi_reduction <minsi>, %14, %cst_4 [1] : vector<2x16xi32> to vector<2xi32>
    %16 = vector.shape_cast %15 : vector<2xi32> to vector<2x1xi32>
    %c0_5 = arith.constant 0 : index
    %c0_6 = arith.constant 0 : index
    %17 = vector.load %arg8[%c0_5, %c0_6] : memref<2x1xi32, #tpu.memory_space<vmem>>, vector<2x1xi32>
    %18 = arith.minsi %17, %16 : vector<2x1xi32>
    %c0_7 = arith.constant 0 : index
    %c0_8 = arith.constant 0 : index
    %19 = vector.load %arg8[%c0_7, %c0_8] : memref<2x1xi32, #tpu.memory_space<vmem>>, vector<2x1xi32>
    tpu.vector_store %arg8[%c0_7, %c0_8], %18 {strides = array<i32>} : memref<2x1xi32, #tpu.memory_space<vmem>>, vector<2x1xi32>,
    %c0_9 = arith.constant 0 : index
    %c0_10 = arith.constant 0 : index
    %c0_11 = arith.constant 0 : index
    %20 = vector.load %arg2[%c0_9, %c0_10, %c0_11] : memref<2x16x32xf32, #tpu.memory_space<vmem>>, vector<2x16x32xf32>
    %21 = tpu.iota {dimensions = array<i32: 1>} : vector<2x16x1xi32>
    %22 = vector.broadcast %0 : i32 to vector<2x16x1xi32>
    %23 = arith.addi %22, %21 : vector<2x16x1xi32>
    %24 = vector.shape_cast %18 : vector<2x1xi32> to vector<2x1x1xi32>
    %25 = vector.broadcast %24 : vector<2x1x1xi32> to vector<2x16x1xi32>
    %26 = arith.cmpi sle, %23, %25 : vector<2x16x1xi32>
    %c16_i32_12 = arith.constant 16 : i32
    %27 = vector.broadcast %c16_i32_12 : i32 to vector<2x16x1xi32>
    %28 = arith.cmpi slt, %23, %27 : vector<2x16x1xi32>
    %29 = arith.andi %26, %28 : vector<2x16x1xi1>
    %c0_13 = arith.constant 0 : index
    %c0_14 = arith.constant 0 : index
    %30 = vector.load %arg7[%c0_13, %c0_14] : memref<2x32xf32, #tpu.memory_space<vmem>>, vector<2x32xf32>
    %31 = math.tanh %20 : vector<2x16x32xf32>
    %cst_15 = arith.constant 0.000000e+00 : f32
    %32 = vector.shape_cast %29 : vector<2x16x1xi1> to vector<2x16x1xi1>
    %33 = vector.broadcast %32 : vector<2x16x1xi1> to vector<2x16x32xi1>
    %34 = vector.broadcast %cst_15 : f32 to vector<2x16x32xf32>
    %35 = arith.select %33, %31, %34 : vector<2x16x32xi1>, vector<2x16x32xf32>
    %cst_16 = arith.constant dense<0.000000e+00> : vector<2x32xf32>
    %36 = vector.multi_reduction <add>, %35, %cst_16 [1] : vector<2x16x32xf32> to vector<2x32xf32>
    %37 = arith.addf %30, %36 : vector<2x32xf32>
    %c0_17 = arith.constant 0 : index
    %c0_18 = arith.constant 0 : index
    %38 = vector.load %arg7[%c0_17, %c0_18] : memref<2x32xf32, #tpu.memory_space<vmem>>, vector<2x32xf32>
    tpu.vector_store %arg7[%c0_17, %c0_18], %37 {strides = array<i32>} : memref<2x32xf32, #tpu.memory_space<vmem>>, vector<2x32xf32>,
    %c0_i32_19 = arith.constant 0 : i32
    %39 = arith.cmpi eq, %arg1, %c0_i32_19 : i32
    %40 = arith.extui %39 : i1 to i32
    %c0_i32_20 = arith.constant 0 : i32
    %41 = arith.cmpi ne, %40, %c0_i32_20 : i32
    scf.if %41 {
      %c0_21 = arith.constant 0 : index
      %c0_22 = arith.constant 0 : index
      %42 = vector.load %arg8[%c0_21, %c0_22] : memref<2x1xi32, #tpu.memory_space<vmem>>, vector<2x1xi32>
      %c1_i32 = arith.constant 1 : i32
      %43 = vector.broadcast %c1_i32 : i32 to vector<2x1xi32>
      %44 = arith.addi %42, %43 : vector<2x1xi32>
      %c16_i32_23 = arith.constant 16 : i32
      %45 = vector.broadcast %c16_i32_23 : i32 to vector<2x1xi32>
      %46 = arith.minsi %44, %45 : vector<2x1xi32>
      %47 = arith.sitofp %46 : vector<2x1xi32> to vector<2x1xf32>
      %48 = tpu.reciprocal %47 {approx = true} : vector<2x1xf32> -> vector<2x1xf32>
      %c0_24 = arith.constant 0 : index
      %c0_25 = arith.constant 0 : index
      %49 = vector.load %arg7[%c0_24, %c0_25] : memref<2x32xf32, #tpu.memory_space<vmem>>, vector<2x32xf32>
      %50 = vector.broadcast %48 : vector<2x1xf32> to vector<2x32xf32>
      %51 = arith.mulf %49, %50 : vector<2x32xf32>
      %c0_26 = arith.constant 0 : index
      %c0_27 = arith.constant 0 : index
      %52 = vector.load %arg4[%c0_26, %c0_27] : memref<32x128xf32, #tpu.memory_space<vmem>>, vector<32x128xf32>
      %cst_28 = arith.constant dense<0.000000e+00> : vector<2x128xf32>
      %53 = tpu.matmul %51, %52, %cst_28 {dimension_numbers = #tpu.dot_dimension_numbers<[1], [0], [0], [1], [0, 0, 1, 1], [], []>} : vector<2x32xf32>, vector<32x128xf32>, vector<2x128xf32> -> vector<2x128xf32>
      %c0_29 = arith.constant 0 : index
      %c0_30 = arith.constant 0 : index
      %54 = vector.load %arg5[%c0_29, %c0_30] : memref<1x128xf32, #tpu.memory_space<vmem>>, vector<1x128xf32>
      %55 = vector.broadcast %54 : vector<1x128xf32> to vector<2x128xf32>
      %56 = arith.addf %53, %55 : vector<2x128xf32>
      %c0_31 = arith.constant 0 : index
      %c0_32 = arith.constant 0 : index
      %57 = vector.load %arg6[%c0_31, %c0_32] : memref<2x128xf32, #tpu.memory_space<vmem>>, vector<2x128xf32>
      tpu.vector_store %arg6[%c0_31, %c0_32], %56 {strides = array<i32>} : memref<2x128xf32, #tpu.memory_space<vmem>>, vector<2x128xf32>,
    } else {
    }
    return
  }
  func.func @transform_0(%arg0: i32, %arg1: i32) -> (i32, i32, i32) {
    %c0_i32 = arith.constant 0 : i32
    %c0_i32_0 = arith.constant 0 : i32
    return %arg0, %arg1, %c0_i32 : i32, i32, i32
  }
  func.func @transform_1(%arg0: i32, %arg1: i32) -> (i32, i32) {
    %c0_i32 = arith.constant 0 : i32
    return %arg0, %arg1 : i32, i32
  }
  func.func @transform_2(%arg0: i32, %arg1: i32) -> (i32, i32) {
    %c0_i32 = arith.constant 0 : i32
    %c0_i32_0 = arith.constant 0 : i32
    %c0_i32_1 = arith.constant 0 : i32
    return %c0_i32, %c0_i32_0 : i32, i32
  }
  func.func @transform_3(%arg0: i32, %arg1: i32) -> (i32, i32) {
    %c0_i32 = arith.constant 0 : i32
    %c0_i32_0 = arith.constant 0 : i32
    %c0_i32_1 = arith.constant 0 : i32
    return %c0_i32, %c0_i32_0 : i32, i32
  }
  func.func @transform_4(%arg0: i32, %arg1: i32) -> (i32, i32) {
    %c0_i32 = arith.constant 0 : i32
    %c0_i32_0 = arith.constant 0 : i32
    return %arg0, %c0_i32 : i32, i32
  }
}

</mosaic_0001>

<llo_original>
// kernel: tpu_custom_call.1
$region0: #{tpu_custom_call.1}
  #allocation0 [shape = 'u32[]', space=smem, size = 0x4, offset = 0x4, fixed_abs, tag = 'smem constant byte address 0x4 - core index']
  #allocation1 [shape = 'u32[144,128]{1,0:T(1,128)}', space=vmem, size = 0x12000, scoped, tag = 'internal scratch']
  #allocation2 [shape = 'f32[2,32]{1,0:T(2,128)}', space=vmem, size = 0x400, scoped, tag = 'scratch operand']
  #allocation3 [shape = 's32[2,1]{1,0:T(2,128)}', space=vmem, size = 0x400, scoped, tag = 'scratch operand']
  %s0 = inlined_call_operand.hbm [shape: f32[2,16,32], index: 0, kind: input, shape index: {}]
  %s1 = inlined_call_operand.hbm [shape: f32[2,16], index: 1, kind: input, shape index: {}]
  %s2 = inlined_call_operand.hbm [shape: f32[32,128], index: 2, kind: input, shape index: {}]
  %s3 = inlined_call_operand.vmem [shape: f32[1,128], index: 3, kind: input, shape index: {}]
  %s4 = inlined_call_operand.hbm [shape: f32[2,128], index: 4, kind: output, shape index: {}]
  %s5 = sld [smem:[#allocation0]]
  $region46: #{tpu_custom_call.1} parent=0
    _
  %s7 = ssub.s32 1, %s5
  %s8 = scalar_select 0, %s7, %s5
  $region1: #{tpu_custom_call.1} parent=0
    #allocation4 [shape = 'u8[16384]{0}', space=vmem, size = 0x4000, scoped, tag = 'input window, operand 0, single buffered']
    #allocation5 [shape = 's32[1]{0}', space=sflag, size = 0x4, scoped, tag = 'scoped memory for tpu_custom_call.1']
    #allocation6 [shape = 's32[1]{0}', space=sflag, size = 0x4, scoped, tag = 'scoped memory for tpu_custom_call.1']
    #allocation7 [shape = 'u8[1024]{0}', space=vmem, size = 0x400, scoped, tag = 'input window, operand 1, single buffered']
    #allocation8 [shape = 's32[1]{0}', space=sflag, size = 0x4, scoped, tag = 'scoped memory for tpu_custom_call.1']
    #allocation9 [shape = 'u8[16384]{0}', space=vmem, size = 0x4000, scoped, tag = 'input window, operand 2, single buffered']
    #allocation10 [shape = 'u8[1024]{0}', space=vmem, size = 0x400, scoped, tag = 'output window, operand 0, single buffered']
    %9 = vsyncpa [#allocation5], 0
    %10 = vsyncpa [#allocation8], 0
    %11 = vsyncpa [#allocation6], 0
    // Predicated region
    $region2: #{tpu_custom_call.1} parent=1 // pred_check
      _
    $region3: #{tpu_custom_call.1} parent=1 // pred_check_branch
      %13 = sbr.rel (0) target = $region5
    $region4: #{tpu_custom_call.1} parent=1 // pred_region
      %s15 = ssub.s32 512, 512
      %16 = vsyncadd [#allocation5], %s15
      %s17 = sshll.u32 [#allocation4], 4
      %s18 = int_to_ptr.vmem [resolvable:$true] %s17
      %23 = dma.hbm_to_vmem [thread:$0]  %s0, 512, %s18, [#allocation5], 128, 128, 8
    $region5: #{tpu_custom_call.1} parent=1 // pred_fallthru
      _
    // Predicated region
    $region6: #{tpu_custom_call.1} parent=1 // pred_check
      _
    $region7: #{tpu_custom_call.1} parent=1 // pred_check_branch
      %25 = sbr.rel (0) target = $region9
    $region8: #{tpu_custom_call.1} parent=1 // pred_region
      %s27 = ssub.s32 32, 32
      %28 = vsyncadd [#allocation8], %s27
      %s30 = sshll.u32 [#allocation7], 4
      %s31 = int_to_ptr.vmem [resolvable:$true] %s30
      %33 = dma.hbm_to_vmem [thread:$0]  %s1, 32, %s31, [#allocation8]
    $region9: #{tpu_custom_call.1} parent=1 // pred_fallthru
      _
    // Predicated region
    $region10: #{tpu_custom_call.1} parent=1 // pred_check
      _
    $region11: #{tpu_custom_call.1} parent=1 // pred_check_branch
      %35 = sbr.rel (0) target = $region13
    $region12: #{tpu_custom_call.1} parent=1 // pred_region
      %s37 = ssub.s32 512, 512
      %38 = vsyncadd [#allocation8], %s37
      %s39 = sshll.u32 [#allocation9], 4
      %s40 = int_to_ptr.vmem [resolvable:$true] %s39
      %45 = dma.hbm_to_vmem [thread:$0]  %s2, 512, %s40, [#allocation8], 128, 128, 8
    $region13: #{tpu_custom_call.1} parent=1 // pred_fallthru
      _
    // Predicated region
    $region14: #{tpu_custom_call.1} parent=1 // pred_check
      _
    $region15: #{tpu_custom_call.1} parent=1 // pred_check_branch
      %47 = sbr.rel (0) target = $region17
    $region16: #{tpu_custom_call.1} parent=1 // pred_region
      _
    $region17: #{tpu_custom_call.1} parent=1 // pred_fallthru
      _
    // Predicated region
    $region18: #{tpu_custom_call.1} parent=1 // pred_check
      _
    $region19: #{tpu_custom_call.1} parent=1 // pred_check_branch
      %49 = sbr.rel (0) target = $region21
    $region20: #{tpu_custom_call.1} parent=1 // pred_region
      %50 = dma.done [#allocation5], 512
    $region21: #{tpu_custom_call.1} parent=1 // pred_fallthru
      _
    // Predicated region
    $region22: #{tpu_custom_call.1} parent=1 // pred_check
      _
    $region23: #{tpu_custom_call.1} parent=1 // pred_check_branch
      %52 = sbr.rel (0) target = $region25
    $region24: #{tpu_custom_call.1} parent=1 // pred_region
      %53 = dma.done [#allocation8], 32
    $region25: #{tpu_custom_call.1} parent=1 // pred_fallthru
      _
    // Predicated region
    $region26: #{tpu_custom_call.1} parent=1 // pred_check
      _
    $region27: #{tpu_custom_call.1} parent=1 // pred_check_branch
      %55 = sbr.rel (0) target = $region29
    $region28: #{tpu_custom_call.1} parent=1 // pred_region
      %56 = dma.done [#allocation8], 512
    $region29: #{tpu_custom_call.1} parent=1 // pred_fallthru
      _
    %s57 = smul.u32 0, 16
    %p58 = scmp.eq.s32.totalorder 0, 0
    // Predicated region
    $region30: #{tpu_custom_call.1} parent=1 // pred_check
      %p59 = pneg %p58
    $region31: #{tpu_custom_call.1} parent=1 // pred_check_branch
      %61 = sbr.rel (%p59) target = $region33
    $region32: #{tpu_custom_call.1} parent=1 // pred_region
      %vm62 = vcmask 254976
      %63 = vst.msk [vmem:[#allocation2] sm:$0x3] %vm62, 0.0
      %vm64 = vcmask 1024
      %65 = vst.msk [vmem:[#allocation3] sm:$0x3] %vm64, 16
    $region33: #{tpu_custom_call.1} parent=1 // pred_fallthru
      _
    %v66 = vld [vmem:[#allocation7] sm:$0x3]
    %v67 = vlaneseq
    %v68 = vand.u32 %v67, 127
    %v69 = vstv %s57
    %v70 = vadd.s32 %v69, %v68
    %vm71 = vcmp.lt.f32.partialorder %v66, 0.0
    %vm72 = vcmp.lt.s32.totalorder %v70, 16
    %vm73 = vmand %vm71, %vm72
    %v74 = vsel %vm73, %v70, 16
    %vm75 = vcmask 123904
    %v76 = vsel %vm75, %v74, 2147483647
    %v77 = vand.u32 %v76, 65535
    %v78 = vshra.s32 %v76, 16
    %v79 = vcvt.s32.f32 %v77
    %v80 = vcvt.s32.f32 %v78
    %81 = vmin.xlane.f32.xlu0 %v80
    %v82 = vpop.xlane.xlu0 %81
    %vm83 = vcmp.eq.f32.partialorder %v80, %v82
    %v84 = vsel %vm83, %v79, inf
    %85 = vmin.xlane.f32.xlu0 %v84
    %v86 = vpop.xlane.xlu0 %85
    %v87 = vcvt.f32.s32 %v86
    %v88 = vcvt.f32.s32 %v82
    %v89 = vshll.u32 %v88, 16
    %v90 = vadd.s32 %v89, %v87
    %v91 = vld [vmem:[#allocation3] sm:$0x3]
    %vm92 = vcmp.lt.s32.totalorder %v91, %v90
    %v93 = vsel %vm92, %v91, %v90
    %vm94 = vcmask 1024
    %95 = vst.msk [vmem:[#allocation3] sm:$0x3] %vm94, %v93
    %v96 = vld [vmem:[#allocation4] sm:$0xff]
    %v97 = vld [vmem:[#allocation4 + $0x8] sm:$0xff]
    %v98 = vld [vmem:[#allocation4 + $0x10] sm:$0xff]
    %v99 = vld [vmem:[#allocation4 + $0x18] sm:$0xff]
    %v100 = vlaneseq
    %v101 = vshrl.u32 %v100, 7
    %v102 = vadd.s32 %v101, 8
    %v103 = vadd.s32 %v69, %v101
    %v104 = vadd.s32 %v69, %v102
    %v106 = vunpack.c.l.s4 1966171168
    %v107 = vunpack.c.0.s8 %v106
    %v108 = vlaneseq
    %v109 = vshrl.u32 %v108, 7
    %v110 = vsub.s32 %v107, %v109
    %v111 = vrot.slane %v93, %v110
    %v112 = vcombine.high %v111, %v111
    %v114 = vunpack.c.l.s4 1966171168
    %v115 = vunpack.c.0.s8 %v114
    %v116 = vlaneseq
    %v117 = vshrl.u32 %v116, 7
    %v118 = vsub.s32 %v115, %v117
    %v119 = vrot.slane %v111, %v118
    %v121 = vunpack.c.l.s4 1966171168
    %v122 = vunpack.c.0.s8 %v121
    %v123 = vlaneseq
    %v124 = vshrl.u32 %v123, 7
    %v125 = vsub.s32 %v122, %v124
    %v126 = vrot.slane %v112, %v125
    %v127 = vlaneseq
    %v128 = vshrl.u32 %v127, 7
    %v129 = vsub.s32 0, %v128
    %v130 = vrot.slane %v119, %v129
    %v131 = vlaneseq
    %v132 = vshrl.u32 %v131, 7
    %v133 = vsub.s32 0, %v132
    %v134 = vrot.slane %v126, %v133
    %vm135 = vcmp.le.s32.totalorder %v103, %v130
    %vm136 = vcmp.le.s32.totalorder %v104, %v130
    %vm137 = vcmp.le.s32.totalorder %v103, %v134
    %vm138 = vcmp.le.s32.totalorder %v104, %v134
    %vm139 = vcmp.lt.s32.totalorder %v103, 16
    %vm140 = vcmp.lt.s32.totalorder %v104, 16
    %vm141 = vmand %vm135, %vm139
    %vm142 = vmand %vm136, %vm140
    %vm143 = vmand %vm137, %vm139
    %vm144 = vmand %vm138, %vm140
    %v145 = vld [vmem:[#allocation2] sm:$0x3]
    %v146 = vtanh.pop %v96
    %v147 = vtanh.pop %v97
    %v148 = vtanh.pop %v98
    %v149 = vtanh.pop %v99
    %v150 = vsel %vm141, 1, 0
    %v151 = vsel %vm142, 1, 0
    %v152 = vsel %vm143, 1, 0
    %v153 = vsel %vm144, 1, 0
    %154 = vset.pattern.permute.xlu0 0
    %155 = vperm.xlu0 %154, %v150
    %v156 = vpop.permute.xlu0 %155
    %157 = vset.pattern.permute.xlu0 0
    %158 = vperm.xlu0 %157, %v151
    %v159 = vpop.permute.xlu0 %158
    %160 = vset.pattern.permute.xlu0 0
    %161 = vperm.xlu0 %160, %v152
    %v162 = vpop.permute.xlu0 %161
    %163 = vset.pattern.permute.xlu0 0
    %164 = vperm.xlu0 %163, %v153
    %v165 = vpop.permute.xlu0 %164
    %vm166 = vcmp.eq.s32.totalorder %v156, 1
    %vm167 = vcmp.eq.s32.totalorder %v159, 1
    %vm168 = vcmp.eq.s32.totalorder %v162, 1
    %vm169 = vcmp.eq.s32.totalorder %v165, 1
    %v170 = vsel %vm166, %v146, 0.0
    %v171 = vsel %vm167, %v147, 0.0
    %v172 = vsel %vm168, %v148, 0.0
    %v173 = vsel %vm169, %v149, 0.0
    %vm174 = vcmask 261120
    %v175 = vsel %vm174, %v170, 0.0
    %v176 = vsel %vm174, %v171, 0.0
    %v177 = vadd.f32 %v175, %v176
    %v178 = vrot.slane %v177, 4
    %v179 = vadd.f32 %v177, %v178
    %v180 = vrot.slane %v179, 2
    %v181 = vadd.f32 %v179, %v180
    %v182 = vrot.slane %v181, 1
    %v183 = vadd.f32 %v181, %v182
    %v184 = vsel %vm174, %v172, 0.0
    %v185 = vsel %vm174, %v173, 0.0
    %v186 = vadd.f32 %v184, %v185
    %v187 = vrot.slane %v186, 4
    %v188 = vadd.f32 %v186, %v187
    %v189 = vrot.slane %v188, 2
    %v190 = vadd.f32 %v188, %v189
    %v191 = vrot.slane %v190, 1
    %v192 = vadd.f32 %v190, %v191
    %vm195 = vcmask 1041409
    %v196 = vsel %vm195, %v192, %v183
    %v198 = vadd.f32 %v145, %v196
    %vm199 = vcmask 254976
    %200 = vst.msk [vmem:[#allocation2] sm:$0x3] %vm199, %v198
    // Predicated region
    $region34: #{tpu_custom_call.1} parent=1 // pred_check
      %p201 = pneg %p58
    $region35: #{tpu_custom_call.1} parent=1 // pred_check_branch
      %203 = sbr.rel (%p201) target = $region37
    $region36: #{tpu_custom_call.1} parent=1 // pred_region
      %v204 = vld [vmem:[#allocation3] sm:$0x3]
      %v205 = vadd.s32 %v204, 1
      %vm206 = vcmp.lt.s32.totalorder %v205, 16
      %v207 = vsel %vm206, %v205, 16
      %v208 = vcvt.s32.f32 %v207
      %v209 = vrcp.pop %v208
      %v210 = vld [vmem:[#allocation2] sm:$0x3]
      %212 = vset.pattern.permute.xlu0 0
      %213 = vperm.xlu0 %212, %v209
      %v214 = vpop.permute.xlu0 %213
      %v216 = vmul.f32 %v210, %v214
      %v217 = vld [vmem:[#allocation9] sm:$0xff]
      %v218 = vld [vmem:[#allocation9 + $0x8] sm:$0xff]
      %v219 = vld [vmem:[#allocation9 + $0x10] sm:$0xff]
      %v220 = vld [vmem:[#allocation9 + $0x18] sm:$0xff]
      %v221 = vld [vmem:[%s3] sm:$0x1]
      %v223 = vlaneseq
      %v224 = vshrl.u32 %v223, 7
      %v225 = vsub.s32 0, %v224
      %v226 = vrot.slane %v221, %v225
      %v229 = vsel %vm174, %v216, 0
      %231 = vmatprep.subr.mxu0 0.0
      %232 = vmatpush1.msra.mxu0 0.0
      %233 = vmatprep.subr.mxu0 0.0
      %234 = vmatpush1.msra.mxu0 0.0
      %235 = vmatprep.subr.mxu0 0.0
      %236 = vmatpush1.msra.mxu0 0.0
      %237 = vmatprep.subr.mxu0 0.0
      %238 = vmatpush1.msra.mxu0 0.0
      %239 = vmatprep.subr.mxu0 0.0
      %240 = vmatpush1.msra.mxu0 0.0
      %241 = vmatprep.subr.mxu0 0.0
      %242 = vmatpush1.msra.mxu0 0.0
      %243 = vmatprep.subr.mxu0 0.0
      %244 = vmatpush1.msra.mxu0 0.0
      %245 = vmatprep.subr.mxu0 0.0
      %246 = vmatpush1.msra.mxu0 0.0
      %247 = vmatprep.subr.mxu0 0.0
      %248 = vmatpush1.msra.mxu0 0.0
      %249 = vmatprep.subr.mxu0 0.0
      %250 = vmatpush1.msra.mxu0 0.0
      %251 = vmatprep.subr.mxu0 0.0
      %252 = vmatpush1.msra.mxu0 0.0
      %253 = vmatprep.subr.mxu0 0.0
      %254 = vmatpush1.msra.mxu0 0.0
      %255 = vmatprep.subr.mxu0 0.0
      %256 = vmatpush1.msra.mxu0 %v220
      %257 = vmatprep.subr.mxu0 0.0
      %258 = vmatpush1.msra.mxu0 %v219
      %259 = vmatprep.subr.mxu0 0.0
      %260 = vmatpush1.msra.mxu0 %v218
      %261 = vmatprep.subr.mxu0 0.0
      %262 = vmatpush1.msra.mxu0 %v217
      %263 = vmatprep.subr.mxu0 0.0
      %264 = vmatpush2.msra.mxu0 0.0
      %265 = vmatprep.subr.mxu0 0.0
      %266 = vmatpush2.msra.mxu0 0.0
      %267 = vmatprep.subr.mxu0 0.0
      %268 = vmatpush2.msra.mxu0 0.0
      %269 = vmatprep.subr.mxu0 0.0
      %270 = vmatpush2.msra.mxu0 0.0
      %271 = vmatprep.subr.mxu0 0.0
      %272 = vmatpush2.msra.mxu0 0.0
      %273 = vmatprep.subr.mxu0 0.0
      %274 = vmatpush2.msra.mxu0 0.0
      %275 = vmatprep.subr.mxu0 0.0
      %276 = vmatpush2.msra.mxu0 0.0
      %277 = vmatprep.subr.mxu0 0.0
      %278 = vmatpush2.msra.mxu0 0.0
      %279 = vmatprep.subr.mxu0 0.0
      %280 = vmatpush2.msra.mxu0 0.0
      %281 = vmatprep.subr.mxu0 0.0
      %282 = vmatpush2.msra.mxu0 0.0
      %283 = vmatprep.subr.mxu0 0.0
      %284 = vmatpush2.msra.mxu0 0.0
      %285 = vmatprep.subr.mxu0 0.0
      %286 = vmatpush2.msra.mxu0 0.0
      %287 = vmatprep.subr.mxu0 0.0
      %288 = vmatpush2.msra.mxu0 0.0
      %289 = vmatprep.subr.mxu0 0.0
      %290 = vmatpush2.msra.mxu0 0.0
      %291 = vmatprep.subr.mxu0 0.0
      %292 = vmatpush2.msra.mxu0 0.0
      %293 = vmatprep.subr.mxu0 0.0
      %294 = vmatpush2.msra.mxu0 0.0
      %295 = vmatprep.mubr.f32.mxu0 0.0
      %296 = vmatmul.mubr.f32.gmra.mxu0 %v229
      %v297 = vpop.f32.mrf.mxu0
      %v298 = vadd.f32 %v226, %v297
      %v299 = vpop.f32.mrf.mxu0
      %300 = vdwg.mxu0
      %301 = vst [vmem:[#allocation10] sm:$0x3] %v298
    $region37: #{tpu_custom_call.1} parent=1 // pred_fallthru
      _
    // Predicated region
    $region38: #{tpu_custom_call.1} parent=1 // pred_check
      _
    $region39: #{tpu_custom_call.1} parent=1 // pred_check_branch
      %303 = sbr.rel (0) target = $region41
    $region40: #{tpu_custom_call.1} parent=1 // pred_region
      %s305 = ssub.s32 32, 32
      %306 = vsyncadd [#allocation6], %s305
      %s308 = sshll.u32 [#allocation10], 4
      %s309 = int_to_ptr.vmem [resolvable:$true] %s308
      %311 = dma.vmem_to_hbm [thread:$0]  %s309, 32, %s4, [#allocation6]
    $region41: #{tpu_custom_call.1} parent=1 // pred_fallthru
      _
    // Predicated region
    $region42: #{tpu_custom_call.1} parent=1 // pred_check
      _
    $region43: #{tpu_custom_call.1} parent=1 // pred_check_branch
      %313 = sbr.rel (0) target = $region45
    $region44: #{tpu_custom_call.1} parent=1 // pred_region
      %314 = dma.done [#allocation6], 32
    $region45: #{tpu_custom_call.1} parent=1 // pred_fallthru
      _
    %315 = vsyncpa [#allocation5], 1
    %316 = vsyncpa [#allocation8], 1
    %317 = vsyncpa [#allocation6], 1

</llo_original>
